<compile_context>
chip_gen: v7x
topology: tpu7x:2x2x1
jax: 0.10.0
libtpu: 0.0.40
codegen_flags: <defaults>
</compile_context>

<pallas_src>
import functools

import jax
import jax.numpy as jnp
import numpy as np
from jax import lax
from jax.experimental import pallas as pl
from jax.experimental.pallas import tpu as pltpu

NEG_SLOPE = 0.2    # LeakyReLU negative slope (module default)
NEG_BIG = -1e30    # finite stand-in for -inf (keeps gathers/maxes finite)


def _round_up(x, m):
    return ((x + m - 1) // m) * m


def _tpu_generation():
    """Best-effort TPU generation sniff for tile / VMEM budgeting."""
    try:
        kind = jax.devices()[0].device_kind.lower()
    except Exception:
        return 0
    for g in range(9, 1, -1):
        if f"v{g}" in kind:
            return g
    return 0


# ---------------------------------------------------------------------------
# Kernel A: fused node projections (grid over node-row tiles)
# ---------------------------------------------------------------------------
def node_proj_kernel(h_ref, wcat_ref, bres_ref, alr_ref,
                     emb_ref, res_ref, hlr_ref, *, HD, cdt):
    z = jnp.dot(h_ref[...].astype(cdt), wcat_ref[...].astype(cdt),
                preferred_element_type=jnp.float32)
    emb = z[:, :HD]
    emb = jnp.where(jnp.isnan(emb), 0.0, emb)         # emb[torch.isnan(emb)] = 0
    emb_ref[...] = emb
    res_ref[...] = z[:, HD:] + bres_ref[...]          # residual path (+ bias)
    hlr_ref[...] = jnp.dot(emb.astype(cdt), alr_ref[...].astype(cdt),
                           preferred_element_type=jnp.float32)   # [hl | hr]


# ---------------------------------------------------------------------------
# Kernel C: edge attention + stable edge softmax + aggregation
# grid = (3 phases, n_edge_tiles), phase-major (edge tiles innermost).
#   phase 0: compute + cache LeakyReLU logits, per-destination per-head max
#   phase 1: p = exp(att - m[col]) (cached), per-destination denominators
#   phase 2: alpha = p / den[col]; scatter-add alpha-weighted source embeddings
# Output [N_pad, HD] is a VMEM-resident accumulator (constant out BlockSpec).
# ---------------------------------------------------------------------------
def edge_attn_agg_kernel(row_ref, col_ref, col_lane_ref, he_ref,
                         emb_ref, hlr_ref, out_ref,
                         p_ref, m_ref, den_ref, *, H, D, E_t, N_pad, cdt):
    phase = pl.program_id(0)
    tile = pl.program_id(1)

    col_ids = col_ref[...]                              # [E_t, 1] (pad rows = -1)
    valid = col_ids >= 0                                # [E_t, 1] bool

    node_lane = lax.broadcasted_iota(jnp.int32, (E_t, N_pad), 1)
    node_sub = lax.broadcasted_iota(jnp.int32, (N_pad, E_t), 0)
    scat_mask = col_lane_ref[...] == node_sub           # [N_pad, E_t] scatter-by-dst

    def g_col():                                        # gather-by-dst one-hot
        return (col_ids == node_lane).astype(cdt)

    def g_row():                                        # gather-by-src one-hot
        return (row_ref[...] == node_lane).astype(cdt)

    @pl.when((phase == 0) & (tile == 0))
    def _init():
        m_ref[...] = jnp.full(m_ref.shape, NEG_BIG, jnp.float32)
        den_ref[...] = jnp.zeros(den_ref.shape, jnp.float32)
        out_ref[...] = jnp.zeros(out_ref.shape, jnp.float32)

    @pl.when(phase == 0)
    def _logits_and_segment_max():
        hlr = hlr_ref[...].astype(cdt)                  # [N_pad, 2H]
        hl_e = jnp.dot(g_row(), hlr[:, :H], preferred_element_type=jnp.float32)
        hr_e = jnp.dot(g_col(), hlr[:, H:], preferred_element_type=jnp.float32)
        att = hl_e + hr_e + he_ref[...]                 # [E_t, H]
        att = jnp.where(att >= 0, att, NEG_SLOPE * att)  # LeakyReLU
        p_ref[tile] = att                               # cache logits for phase 1
        att_t = att.T                                   # [H, E_t] (small XLU xpose)
        cols = [jnp.max(jnp.where(scat_mask, att_t[hh:hh + 1, :], NEG_BIG),
                        axis=1, keepdims=True)          # [N_pad, 1]
                for hh in range(H)]
        m_ref[...] = jnp.maximum(m_ref[...], jnp.concatenate(cols, axis=1))

    @pl.when(phase == 1)
    def _segment_denominator():
        att = p_ref[tile]                               # cached logits [E_t, H]
        m_e = jnp.dot(g_col(), m_ref[...].astype(cdt),
                      preferred_element_type=jnp.float32)
        p = jnp.where(valid, jnp.exp(att - m_e), 0.0)   # stable numerators
        p_ref[tile] = p                                 # cache p for phase 2
        den_ref[...] += jnp.dot(scat_mask.astype(cdt), p.astype(cdt),
                                preferred_element_type=jnp.float32)

    @pl.when(phase == 2)
    def _aggregate():
        p = p_ref[tile]                                 # cached numerators
        den_e = jnp.dot(g_col(), den_ref[...].astype(cdt),
                        preferred_element_type=jnp.float32)
        alpha = p / jnp.maximum(den_e, 1e-30)           # edge softmax [E_t, H]
        emb_src = jnp.dot(g_row(), emb_ref[...].astype(cdt),
                          preferred_element_type=jnp.float32)    # [E_t, HD]
        msg = emb_src * jnp.tile(alpha, (1, D))         # d*H+h lanes -> period-H tile
        out_ref[...] += jnp.dot(scat_mask.astype(cdt), msg.astype(cdt),
                                preferred_element_type=jnp.float32)


# ---------------------------------------------------------------------------
# Epilogue: residual add + ELU (keeps `res` out of Kernel C's VMEM residency)
# ---------------------------------------------------------------------------
def residual_elu_kernel(agg_ref, res_ref, out_ref):
    y = agg_ref[...] + res_ref[...]
    out_ref[...] = jnp.where(y > 0, y, jnp.exp(y) - 1.0)


# ---------------------------------------------------------------------------
# Wrapper
# ---------------------------------------------------------------------------
def simple_hgn_forward(h, row, col, etype, params, *, num_heads, out_dim,
                       edge_dim, num_etypes, num_nodes,
                       compute_dtype=jnp.float32):
    N = int(num_nodes)
    E = int(row.shape[0])
    H, D = int(num_heads), int(out_dim)
    HD = H * D
    in_dim = int(h.shape[1])

    gen = _tpu_generation()
    if gen >= 7:                       # v7x: 64 MiB VMEM per TensorCore
        vmem_budget = 56 * 1024 * 1024
        node_cap, edge_cap = 512, 256
    elif gen >= 4:                     # v4 / v5e / v6e: 128 MiB VMEM
        vmem_budget = 100 * 1024 * 1024
        node_cap, edge_cap = 512, 512
    else:                              # unknown: stay conservative
        vmem_budget = 32 * 1024 * 1024
        node_cap, edge_cap = 256, 256

    # ---- fold all layout permutations into the (static) weights ------------
    W = params["W"]                                  # [in_dim, HD] (h*D+d cols)
    W_res = params["W_res"]                          # [in_dim, HD] (output layout)
    b_res = params["b_res"].reshape(1, HD).astype(jnp.float32)
    a_l = params["a_l"].reshape(H, D)
    a_r = params["a_r"].reshape(H, D)
    a_e = params["a_e"].reshape(H, edge_dim)

    j = jnp.arange(HD)
    d_of, h_of = j // H, j % H
    W_perm = W[:, h_of * D + d_of]                   # emb emitted in d*H+h layout
    w_cat = jnp.concatenate([W_perm, W_res], axis=1).astype(jnp.float32)

    alr = jnp.zeros((HD, 2 * H), jnp.float32)
    alr = alr.at[j, h_of].set(a_l[h_of, d_of])       # emb @ alr -> [hl | hr]
    alr = alr.at[j, H + h_of].set(a_r[h_of, d_of])

    # per-edge-type attention scalar (TypedLinear branch): tiny -> plain JAX
    eo = jnp.einsum("td,tdo->to", params["edge_emb"], params["W_r"])
    eo = eo.reshape(num_etypes, H, edge_dim)
    he_types = jnp.einsum("the,he->th", eo, a_e)     # [T, H]
    he_edges = he_types[etype]                       # [E, H]

    # ---- padding / tile sizes ----------------------------------------------
    tm = node_cap if N >= node_cap else _round_up(N, 8)
    N_pad = _round_up(N, tm)
    e_t = edge_cap if E >= edge_cap else _round_up(E, 8)
    E_pad = _round_up(E, e_t)
    n_nt, n_et = N_pad // tm, E_pad // e_t

    h_p = jnp.zeros((N_pad, in_dim), jnp.float32).at[:N].set(h.astype(jnp.float32))
    row_p = jnp.full((E_pad,), -1, jnp.int32).at[:E].set(row.astype(jnp.int32))
    col_p = jnp.full((E_pad,), -1, jnp.int32).at[:E].set(col.astype(jnp.int32))
    he_p = jnp.zeros((E_pad, H), jnp.float32).at[:E].set(he_edges)
    row_sub = row_p.reshape(E_pad, 1)
    col_sub = col_p.reshape(E_pad, 1)
    col_lane = col_p.reshape(n_et, 1, e_t)

    # ---- Kernel A: fused node projections ----------------------------------
    emb, res, hlr = pl.pallas_call(
        functools.partial(node_proj_kernel, HD=HD, cdt=compute_dtype),
        grid=(n_nt,),
        in_specs=[pl.BlockSpec((tm, in_dim), lambda i: (i, 0)),
                  pl.BlockSpec((in_dim, 2 * HD), lambda i: (0, 0)),
                  pl.BlockSpec((1, HD), lambda i: (0, 0)),
                  pl.BlockSpec((HD, 2 * H), lambda i: (0, 0))],
        out_specs=(pl.BlockSpec((tm, HD), lambda i: (i, 0)),
                   pl.BlockSpec((tm, HD), lambda i: (i, 0)),
                   pl.BlockSpec((tm, 2 * H), lambda i: (i, 0))),
        out_shape=(jax.ShapeDtypeStruct((N_pad, HD), jnp.float32),
                   jax.ShapeDtypeStruct((N_pad, HD), jnp.float32),
                   jax.ShapeDtypeStruct((N_pad, 2 * H), jnp.float32)),
        compiler_params=pltpu.CompilerParams(
            dimension_semantics=("parallel",),
            vmem_limit_bytes=vmem_budget),
        cost_estimate=pl.CostEstimate(
            flops=int(2 * N_pad * in_dim * 2 * HD + 2 * N_pad * HD * 2 * H),
            transcendentals=0,
            bytes_accessed=int(4 * (N_pad * in_dim + in_dim * 2 * HD
                                    + 2 * N_pad * HD + N_pad * 2 * H))),
    )(h_p, w_cat, b_res, alr)

    # ---- Kernel C: edge softmax + aggregation -------------------------------
    agg = pl.pallas_call(
        functools.partial(edge_attn_agg_kernel, H=H, D=D, E_t=e_t,
                          N_pad=N_pad, cdt=compute_dtype),
        grid=(3, n_et),
        in_specs=[pl.BlockSpec((e_t, 1), lambda p, t: (t, 0)),
                  pl.BlockSpec((e_t, 1), lambda p, t: (t, 0)),
                  pl.BlockSpec((None, 1, e_t), lambda p, t: (t, 0, 0)),
                  pl.BlockSpec((e_t, H), lambda p, t: (t, 0)),
                  pl.BlockSpec((N_pad, HD), lambda p, t: (0, 0)),      # emb (resident)
                  pl.BlockSpec((N_pad, 2 * H), lambda p, t: (0, 0))],  # hlr (resident)
        out_specs=pl.BlockSpec((N_pad, HD), lambda p, t: (0, 0)),      # accumulator
        out_shape=jax.ShapeDtypeStruct((N_pad, HD), jnp.float32),
        scratch_shapes=[pltpu.VMEM((n_et, e_t, H), jnp.float32),   # att / p cache
                        pltpu.VMEM((N_pad, H), jnp.float32),       # per-dst max
                        pltpu.VMEM((N_pad, H), jnp.float32)],      # per-dst denom
        compiler_params=pltpu.CompilerParams(
            # MUST stay "arbitrary": the 3-phase accumulation relies on the
            # grid running phase-major with edge tiles innermost/sequential.
            dimension_semantics=("arbitrary", "arbitrary"),
            vmem_limit_bytes=vmem_budget),
        cost_estimate=pl.CostEstimate(
            flops=int(2 * E_pad * N_pad * (2 * HD + 5 * H)),
            transcendentals=int(E_pad * H),
            bytes_accessed=int(4 * (2 * N_pad * HD + N_pad * 2 * H
                                    + 3 * E_pad * (H + 3)))),
    )(row_sub, col_sub, col_lane, he_p, emb, hlr)

    # ---- Epilogue: residual + ELU (memory-bound, tiny) ----------------------
    out_p = pl.pallas_call(
        residual_elu_kernel,
        grid=(n_nt,),
        in_specs=[pl.BlockSpec((tm, HD), lambda i: (i, 0)),
                  pl.BlockSpec((tm, HD), lambda i: (i, 0))],
        out_specs=pl.BlockSpec((tm, HD), lambda i: (i, 0)),
        out_shape=jax.ShapeDtypeStruct((N_pad, HD), jnp.float32),
        compiler_params=pltpu.CompilerParams(
            dimension_semantics=("parallel",),
            vmem_limit_bytes=vmem_budget),
    )(agg, res)

    return out_p[:N]      # already in the PyTorch (d*H + h) output layout


# ---------------------------------------------------------------------------
# Pure-JAX reference (segment ops) for a sanity check
# ---------------------------------------------------------------------------
def reference_forward(h, row, col, etype, params, *, num_heads, out_dim,
                      edge_dim, num_etypes, num_nodes):
    N, H, D = num_nodes, num_heads, out_dim
    E = row.shape[0]
    emb = h @ params["W"]
    emb = jnp.where(jnp.isnan(emb), 0.0, emb).reshape(N, H, D)
    e_in = params["edge_emb"][etype]                                  # [E, ED]
    eo = jnp.einsum("ed,edo->eo", e_in, params["W_r"][etype]).reshape(E, H, edge_dim)
    hl = (params["a_l"] * emb).sum(-1)                                # [N, H]
    hr = (params["a_r"] * emb).sum(-1)
    he = (params["a_e"] * eo).sum(-1)                                 # [E, H]
    att = hl[row] + hr[col] + he
    att = jnp.where(att >= 0, att, NEG_SLOPE * att)
    m = jnp.full((N, H), -jnp.inf).at[col].max(att)
    p = jnp.exp(att - m[col])
    den = jnp.zeros((N, H)).at[col].add(p)
    alpha = p / den[col]
    msg = emb[row] * alpha[:, :, None]
    agg = jnp.zeros((N, H, D)).at[col].add(msg)
    out = agg.transpose(0, 2, 1).reshape(N, D * H)
    out = out + (h @ params["W_res"] + params["b_res"])
    return jnp.where(out > 0, out, jnp.exp(out) - 1.0)


if __name__ == "__main__":
    # small, module-consistent shapes
    N, IN_DIM, OUT_DIM, NUM_HEADS = 16, 32, 32, 4
    EDGE_DIM, NUM_ETYPES, E = 16, 4, 48
    HD = NUM_HEADS * OUT_DIM

    key = jax.random.PRNGKey(0)
    ks = jax.random.split(key, 12)

    def xavier(k, shape, gain=1.414):
        fan_in, fan_out = shape[-2], shape[-1]
        bound = gain * (6.0 / (fan_in + fan_out)) ** 0.5
        return jax.random.uniform(k, shape, jnp.float32, -bound, bound)

    params = {
        "edge_emb": xavier(ks[0], (NUM_ETYPES, EDGE_DIM)),
        "W": xavier(ks[1], (IN_DIM, HD)),
        "W_r": xavier(ks[2], (NUM_ETYPES, EDGE_DIM, EDGE_DIM * NUM_HEADS)),
        "a_l": xavier(ks[3], (1, NUM_HEADS, OUT_DIM)),
        "a_r": xavier(ks[4], (1, NUM_HEADS, OUT_DIM)),
        "a_e": xavier(ks[5], (1, NUM_HEADS, EDGE_DIM)),
        "W_res": xavier(ks[6], (IN_DIM, HD)),
        "b_res": jax.random.uniform(ks[7], (HD,), jnp.float32, -0.1, 0.1),
    }
    # feat_drop = Dropout(0.0) -> identity; beta = 0.0 and no prior edata['alpha'],
    # so the residual-attention branch is skipped (matches reference defaults).

    h = jax.random.normal(ks[8], (N, IN_DIM), jnp.float32)
    row = jax.random.randint(ks[9], (E,), 0, N)
    col = jax.random.randint(ks[10], (E,), 0, N)
    etype = jax.random.randint(ks[11], (E,), 0, NUM_ETYPES)

    kwargs = dict(num_heads=NUM_HEADS, out_dim=OUT_DIM, edge_dim=EDGE_DIM,
                  num_etypes=NUM_ETYPES, num_nodes=N)

    ref = jax.block_until_ready(
        reference_forward(h, row, col, etype, params, **kwargs))

    # f32 MXU path (exact one-hot gathers): tight tolerance vs f32 reference.
    out = jax.block_until_ready(
        simple_hgn_forward(h, row, col, etype, params, **kwargs))
    np.testing.assert_allclose(np.asarray(out), np.asarray(ref),
                               rtol=1e-3, atol=1e-3)

    # bf16 MXU path: one-hots are exact in bf16, but emb/hlr/m/den operands are
    # rounded, so numerics shift at the ~1e-2 level (f32 accumulation kept).
    out_bf16 = jax.block_until_ready(
        simple_hgn_forward(h, row, col, etype, params,
                           compute_dtype=jnp.bfloat16, **kwargs))
    np.testing.assert_allclose(np.asarray(out_bf16), np.asarray(ref),
                               rtol=7e-2, atol=7e-2)

    print("KERNEL_OK")
</pallas_src>

<mosaic_0001>
module attributes {stable_mosaic.version = 11 : i64} {
  func.func @node_proj_kernel(%arg0: i32, %arg1: memref<16x32xf32, #tpu.memory_space<vmem>>, %arg2: memref<32x256xf32, #tpu.memory_space<vmem>>, %arg3: memref<1x128xf32, #tpu.memory_space<vmem>>, %arg4: memref<128x8xf32, #tpu.memory_space<vmem>>, %arg5: memref<16x128xf32, #tpu.memory_space<vmem>>, %arg6: memref<16x128xf32, #tpu.memory_space<vmem>>, %arg7: memref<16x8xf32, #tpu.memory_space<vmem>>) attributes {dimension_semantics = [#tpu.dimension_semantics<parallel>], iteration_bounds = array<i64: 1>, scalar_prefetch = 0 : i64, scratch_operands = 0 : i64, tpu.core_type = #tpu.core_type<tc>, window_params = [{transform_indices = @transform_0, window_bounds = array<i64: 16, 32>}, {pipeline_mode = #tpu.pipeline_mode<synchronous>, transform_indices = @transform_1, window_bounds = array<i64: 32, 256>}, {pipeline_mode = #tpu.pipeline_mode<synchronous>, transform_indices = @transform_2, window_bounds = array<i64: 1, 128>}, {pipeline_mode = #tpu.pipeline_mode<synchronous>, transform_indices = @transform_3, window_bounds = array<i64: 128, 8>}, {transform_indices = @transform_4, window_bounds = array<i64: 16, 128>}, {transform_indices = @transform_5, window_bounds = array<i64: 16, 128>}, {transform_indices = @transform_6, window_bounds = array<i64: 16, 8>}]} {
    %c0 = arith.constant 0 : index
    %c0_0 = arith.constant 0 : index
    %0 = vector.load %arg1[%c0, %c0_0] : memref<16x32xf32, #tpu.memory_space<vmem>>, vector<16x32xf32>
    %c0_1 = arith.constant 0 : index
    %c0_2 = arith.constant 0 : index
    %1 = vector.load %arg2[%c0_1, %c0_2] : memref<32x256xf32, #tpu.memory_space<vmem>>, vector<32x256xf32>
    %cst = arith.constant dense<0.000000e+00> : vector<16x256xf32>
    %2 = tpu.matmul %0, %1, %cst {dimension_numbers = #tpu.dot_dimension_numbers<[1], [0], [0], [1], [0, 0, 1, 1], [], []>} : vector<16x32xf32>, vector<32x256xf32>, vector<16x256xf32> -> vector<16x256xf32>
    %3 = vector.extract_strided_slice %2 {offsets = [0, 0], sizes = [16, 128], strides = [1, 1]} : vector<16x256xf32> to vector<16x128xf32>
    %4 = arith.cmpf one, %3, %3 : vector<16x128xf32>
    %cst_3 = arith.constant 0.000000e+00 : f32
    %5 = vector.broadcast %cst_3 : f32 to vector<16x128xf32>
    %6 = arith.select %4, %5, %3 : vector<16x128xi1>, vector<16x128xf32>
    %c0_4 = arith.constant 0 : index
    %c0_5 = arith.constant 0 : index
    %7 = vector.load %arg5[%c0_4, %c0_5] : memref<16x128xf32, #tpu.memory_space<vmem>>, vector<16x128xf32>
    tpu.vector_store %arg5[%c0_4, %c0_5], %6 {strides = array<i32>} : memref<16x128xf32, #tpu.memory_space<vmem>>, vector<16x128xf32>,
    %8 = vector.extract_strided_slice %2 {offsets = [0, 128], sizes = [16, 128], strides = [1, 1]} : vector<16x256xf32> to vector<16x128xf32>
    %c0_6 = arith.constant 0 : index
    %c0_7 = arith.constant 0 : index
    %9 = vector.load %arg3[%c0_6, %c0_7] : memref<1x128xf32, #tpu.memory_space<vmem>>, vector<1x128xf32>
    %10 = vector.broadcast %9 : vector<1x128xf32> to vector<16x128xf32>
    %11 = arith.addf %8, %10 : vector<16x128xf32>
    %c0_8 = arith.constant 0 : index
    %c0_9 = arith.constant 0 : index
    %12 = vector.load %arg6[%c0_8, %c0_9] : memref<16x128xf32, #tpu.memory_space<vmem>>, vector<16x128xf32>
    tpu.vector_store %arg6[%c0_8, %c0_9], %11 {strides = array<i32>} : memref<16x128xf32, #tpu.memory_space<vmem>>, vector<16x128xf32>,
    %c0_10 = arith.constant 0 : index
    %c0_11 = arith.constant 0 : index
    %13 = vector.load %arg4[%c0_10, %c0_11] : memref<128x8xf32, #tpu.memory_space<vmem>>, vector<128x8xf32>
    %cst_12 = arith.constant dense<0.000000e+00> : vector<16x8xf32>
    %14 = tpu.matmul %6, %13, %cst_12 {dimension_numbers = #tpu.dot_dimension_numbers<[1], [0], [0], [1], [0, 0, 1, 1], [], []>} : vector<16x128xf32>, vector<128x8xf32>, vector<16x8xf32> -> vector<16x8xf32>
    %c0_13 = arith.constant 0 : index
    %c0_14 = arith.constant 0 : index
    %15 = vector.load %arg7[%c0_13, %c0_14] : memref<16x8xf32, #tpu.memory_space<vmem>>, vector<16x8xf32>
    tpu.vector_store %arg7[%c0_13, %c0_14], %14 {strides = array<i32>} : memref<16x8xf32, #tpu.memory_space<vmem>>, vector<16x8xf32>,
    return
  }
  func.func @transform_0(%arg0: i32) -> (i32, i32) {
    %c0_i32 = arith.constant 0 : i32
    %c0_i32_0 = arith.constant 0 : i32
    return %arg0, %c0_i32 : i32, i32
  }
  func.func @transform_1(%arg0: i32) -> (i32, i32) {
    %c0_i32 = arith.constant 0 : i32
    %c0_i32_0 = arith.constant 0 : i32
    %c0_i32_1 = arith.constant 0 : i32
    return %c0_i32, %c0_i32_0 : i32, i32
  }
  func.func @transform_2(%arg0: i32) -> (i32, i32) {
    %c0_i32 = arith.constant 0 : i32
    %c0_i32_0 = arith.constant 0 : i32
    %c0_i32_1 = arith.constant 0 : i32
    return %c0_i32, %c0_i32_0 : i32, i32
  }
  func.func @transform_3(%arg0: i32) -> (i32, i32) {
    %c0_i32 = arith.constant 0 : i32
    %c0_i32_0 = arith.constant 0 : i32
    %c0_i32_1 = arith.constant 0 : i32
    return %c0_i32, %c0_i32_0 : i32, i32
  }
  func.func @transform_4(%arg0: i32) -> (i32, i32) {
    %c0_i32 = arith.constant 0 : i32
    %c0_i32_0 = arith.constant 0 : i32
    return %arg0, %c0_i32 : i32, i32
  }
  func.func @transform_5(%arg0: i32) -> (i32, i32) {
    %c0_i32 = arith.constant 0 : i32
    %c0_i32_0 = arith.constant 0 : i32
    return %arg0, %c0_i32 : i32, i32
  }
  func.func @transform_6(%arg0: i32) -> (i32, i32) {
    %c0_i32 = arith.constant 0 : i32
    %c0_i32_0 = arith.constant 0 : i32
    return %arg0, %c0_i32 : i32, i32
  }
}

</mosaic_0001>

<llo_original>
// kernel: tpu_custom_call.1
$region0: #{tpu_custom_call.1}
  #allocation0 [shape = 'u32[]', space=smem, size = 0x4, offset = 0x4, fixed_abs, tag = 'smem constant byte address 0x4 - core index']
  #allocation1 [shape = 'u32[144,128]{1,0:T(1,128)}', space=vmem, size = 0x12000, scoped, tag = 'internal scratch']
  %s0 = inlined_call_operand.vmem [shape: f32[16,32], index: 0, kind: input, shape index: {}]
  %s1 = inlined_call_operand.vmem [shape: f32[32,256], index: 1, kind: input, shape index: {}]
  %s2 = inlined_call_operand.vmem [shape: f32[1,128], index: 2, kind: input, shape index: {}]
  %s3 = inlined_call_operand.vmem [shape: f32[128,8], index: 3, kind: input, shape index: {}]
  %s4 = inlined_call_operand.hbm [shape: f32[16,128], index: 4, kind: output, shape index: {0}]
  %s5 = inlined_call_operand.hbm [shape: f32[16,128], index: 5, kind: output, shape index: {1}]
  %s6 = inlined_call_operand.vmem [shape: f32[16,8], index: 6, kind: output, shape index: {2}]
  %7 = xla_tuple %s4, %s5, %s6
  %s8 = sld [smem:[#allocation0]]
  $region42: #{tpu_custom_call.1} parent=0
    _
  %s10 = ssub.s32 1, %s8
  %s11 = scalar_select 0, %s10, %s8
  $region1: #{tpu_custom_call.1} parent=0
    #allocation2 [shape = 'u8[8192]{0}', space=vmem, size = 0x2000, scoped, tag = 'output window, operand 0, single buffered']
    #allocation3 [shape = 's32[1]{0}', space=sflag, size = 0x4, scoped, tag = 'scoped memory for tpu_custom_call.1']
    #allocation4 [shape = 'u8[8192]{0}', space=vmem, size = 0x2000, scoped, tag = 'output window, operand 1, single buffered']
    #allocation5 [shape = 's32[1]{0}', space=sflag, size = 0x4, scoped, tag = 'scoped memory for tpu_custom_call.1']
    %12 = vsyncpa [#allocation3], 0
    %13 = vsyncpa [#allocation5], 0
    // Predicated region
    $region2: #{tpu_custom_call.1} parent=1 // pred_check
      _
    $region3: #{tpu_custom_call.1} parent=1 // pred_check_branch
      %15 = sbr.rel (0) target = $region5
    $region4: #{tpu_custom_call.1} parent=1 // pred_region
      _
    $region5: #{tpu_custom_call.1} parent=1 // pred_fallthru
      _
    // Predicated region
    $region6: #{tpu_custom_call.1} parent=1 // pred_check
      _
    $region7: #{tpu_custom_call.1} parent=1 // pred_check_branch
      %17 = sbr.rel (0) target = $region9
    $region8: #{tpu_custom_call.1} parent=1 // pred_region
      _
    $region9: #{tpu_custom_call.1} parent=1 // pred_fallthru
      _
    // Predicated region
    $region10: #{tpu_custom_call.1} parent=1 // pred_check
      _
    $region11: #{tpu_custom_call.1} parent=1 // pred_check_branch
      %19 = sbr.rel (0) target = $region13
    $region12: #{tpu_custom_call.1} parent=1 // pred_region
      _
    $region13: #{tpu_custom_call.1} parent=1 // pred_fallthru
      _
    // Predicated region
    $region14: #{tpu_custom_call.1} parent=1 // pred_check
      _
    $region15: #{tpu_custom_call.1} parent=1 // pred_check_branch
      %21 = sbr.rel (0) target = $region17
    $region16: #{tpu_custom_call.1} parent=1 // pred_region
      _
    $region17: #{tpu_custom_call.1} parent=1 // pred_fallthru
      _
    %v22 = vld [vmem:[%s0] sm:$0xff]
    %v23 = vld [vmem:[%s0 + $0x8] sm:$0xff]
    %v24 = vld [vmem:[%s1] sm:$0xff]
    %v25 = vld [vmem:[%s1 + $0x8] sm:$0xff]
    %v26 = vld [vmem:[%s1 + $0x10] sm:$0xff]
    %v27 = vld [vmem:[%s1 + $0x18] sm:$0xff]
    %v28 = vld [vmem:[%s1 + $0x20] sm:$0xff]
    %v29 = vld [vmem:[%s1 + $0x28] sm:$0xff]
    %v30 = vld [vmem:[%s1 + $0x30] sm:$0xff]
    %v31 = vld [vmem:[%s1 + $0x38] sm:$0xff]
    %vm32 = vcmask 261120
    %v34 = vsel %vm32, %v22, 0
    %v37 = vsel %vm32, %v23, 0
    %39 = vmatprep.subr.mxu0 %v25
    %40 = vmatpush1.msra.mxu0 %v24
    %41 = vmatprep.subr.mxu0 %v27
    %42 = vmatpush1.msra.mxu0 %v26
    %43 = vmatprep.subr.mxu0 %v29
    %44 = vmatpush1.msra.mxu0 %v28
    %45 = vmatprep.subr.mxu0 %v31
    %46 = vmatpush1.msra.mxu0 %v30
    %47 = vmatprep.subr.mxu0 0.0
    %48 = vmatpush1.msra.mxu0 0.0
    %49 = vmatprep.subr.mxu0 0.0
    %50 = vmatpush1.msra.mxu0 0.0
    %51 = vmatprep.subr.mxu0 0.0
    %52 = vmatpush1.msra.mxu0 0.0
    %53 = vmatprep.subr.mxu0 0.0
    %54 = vmatpush1.msra.mxu0 0.0
    %55 = vmatprep.subr.mxu0 0.0
    %56 = vmatpush1.msra.mxu0 0.0
    %57 = vmatprep.subr.mxu0 0.0
    %58 = vmatpush1.msra.mxu0 0.0
    %59 = vmatprep.subr.mxu0 0.0
    %60 = vmatpush1.msra.mxu0 0.0
    %61 = vmatprep.subr.mxu0 0.0
    %62 = vmatpush1.msra.mxu0 0.0
    %63 = vmatprep.subr.mxu0 0.0
    %64 = vmatpush1.msra.mxu0 0.0
    %65 = vmatprep.subr.mxu0 0.0
    %66 = vmatpush1.msra.mxu0 0.0
    %67 = vmatprep.subr.mxu0 0.0
    %68 = vmatpush1.msra.mxu0 0.0
    %69 = vmatprep.subr.mxu0 0.0
    %70 = vmatpush1.msra.mxu0 0.0
    %71 = vmatprep.subr.mxu0 0.0
    %72 = vmatpush1.msra.mxu0 0.0
    %73 = vmatprep.subr.mxu0 0.0
    %74 = vmatpush1.msra.mxu0 0.0
    %75 = vmatprep.subr.mxu0 0.0
    %76 = vmatpush1.msra.mxu0 0.0
    %77 = vmatprep.subr.mxu0 0.0
    %78 = vmatpush1.msra.mxu0 0.0
    %79 = vmatprep.subr.mxu0 0.0
    %80 = vmatpush1.msra.mxu0 0.0
    %81 = vmatprep.subr.mxu0 0.0
    %82 = vmatpush1.msra.mxu0 0.0
    %83 = vmatprep.subr.mxu0 0.0
    %84 = vmatpush1.msra.mxu0 0.0
    %85 = vmatprep.subr.mxu0 0.0
    %86 = vmatpush1.msra.mxu0 0.0
    %87 = vmatprep.subr.mxu0 0.0
    %88 = vmatpush1.msra.mxu0 0.0
    %89 = vmatprep.subr.mxu0 0.0
    %90 = vmatpush1.msra.mxu0 0.0
    %91 = vmatprep.subr.mxu0 0.0
    %92 = vmatpush1.msra.mxu0 0.0
    %93 = vmatprep.subr.mxu0 0.0
    %94 = vmatpush1.msra.mxu0 0.0
    %95 = vmatprep.subr.mxu0 0.0
    %96 = vmatpush1.msra.mxu0 0.0
    %97 = vmatprep.subr.mxu0 0.0
    %98 = vmatpush1.msra.mxu0 0.0
    %99 = vmatprep.subr.mxu0 0.0
    %100 = vmatpush1.msra.mxu0 0.0
    %101 = vmatprep.subr.mxu0 0.0
    %102 = vmatpush1.msra.mxu0 0.0
    %103 = vmatprep.mubr.f32.mxu0 0.0
    %104 = vmatmul.mubr.f32.gmra.mrb[0].mxu0 %v34
    %v105 = vpop.f32.mrb[0].mxu0
    %v106 = vadd.f32 0.0, %v105
    %v107 = vpop.f32.mrb[0].mxu0
    %v108 = vadd.f32 0.0, %v107
    %109 = vmatprep.mubr.f32.mxu0 0.0
    %110 = vmatmul.mubr.f32.gmra.mrb[0].mxu0 %v37
    %v111 = vpop.f32.mrb[0].mxu0
    %v112 = vadd.f32 0.0, %v111
    %v113 = vpop.f32.mrb[0].mxu0
    %v114 = vadd.f32 0.0, %v113
    %115 = vdwg.mxu0
    %vm116 = vcmp.ne.f32.partialorder %v106, %v106
    %vm117 = vcmp.ne.f32.partialorder %v112, %v112
    %v118 = vsel %vm116, 0.0, %v106
    %v119 = vsel %vm117, 0.0, %v112
    %120 = vst [vmem:[#allocation2] sm:$0xff] %v118
    %121 = vst [vmem:[#allocation2 + $0x8] sm:$0xff] %v119
    %v122 = vld [vmem:[%s2] sm:$0x1]
    %v124 = vlaneseq
    %v125 = vshrl.u32 %v124, 7
    %v126 = vsub.s32 0, %v125
    %v127 = vrot.slane %v122, %v126
    %v129 = vadd.f32 %v108, %v127
    %v130 = vadd.f32 %v114, %v127
    %131 = vst [vmem:[#allocation4] sm:$0xff] %v129
    %132 = vst [vmem:[#allocation4 + $0x8] sm:$0xff] %v130
    %v133 = vld [vmem:[%s3] sm:$0xff]
    %v134 = vld [vmem:[%s3 + $0x8] sm:$0xff]
    %v135 = vld [vmem:[%s3 + $0x10] sm:$0xff]
    %v136 = vld [vmem:[%s3 + $0x18] sm:$0xff]
    %v137 = vld [vmem:[%s3 + $0x20] sm:$0xff]
    %v138 = vld [vmem:[%s3 + $0x28] sm:$0xff]
    %v139 = vld [vmem:[%s3 + $0x30] sm:$0xff]
    %v140 = vld [vmem:[%s3 + $0x38] sm:$0xff]
    %v141 = vld [vmem:[%s3 + $0x40] sm:$0xff]
    %v142 = vld [vmem:[%s3 + $0x48] sm:$0xff]
    %v143 = vld [vmem:[%s3 + $0x50] sm:$0xff]
    %v144 = vld [vmem:[%s3 + $0x58] sm:$0xff]
    %v145 = vld [vmem:[%s3 + $0x60] sm:$0xff]
    %v146 = vld [vmem:[%s3 + $0x68] sm:$0xff]
    %v147 = vld [vmem:[%s3 + $0x70] sm:$0xff]
    %v148 = vld [vmem:[%s3 + $0x78] sm:$0xff]
    %149 = vmatprep.subr.mxu0 0.0
    %150 = vmatpush1.msra.mxu0 %v133
    %151 = vmatprep.subr.mxu0 0.0
    %152 = vmatpush1.msra.mxu0 %v134
    %153 = vmatprep.subr.mxu0 0.0
    %154 = vmatpush1.msra.mxu0 %v135
    %155 = vmatprep.subr.mxu0 0.0
    %156 = vmatpush1.msra.mxu0 %v136
    %157 = vmatprep.subr.mxu0 0.0
    %158 = vmatpush1.msra.mxu0 %v137
    %159 = vmatprep.subr.mxu0 0.0
    %160 = vmatpush1.msra.mxu0 %v138
    %161 = vmatprep.subr.mxu0 0.0
    %162 = vmatpush1.msra.mxu0 %v139
    %163 = vmatprep.subr.mxu0 0.0
    %164 = vmatpush1.msra.mxu0 %v140
    %165 = vmatprep.subr.mxu0 0.0
    %166 = vmatpush1.msra.mxu0 %v141
    %167 = vmatprep.subr.mxu0 0.0
    %168 = vmatpush1.msra.mxu0 %v142
    %169 = vmatprep.subr.mxu0 0.0
    %170 = vmatpush1.msra.mxu0 %v143
    %171 = vmatprep.subr.mxu0 0.0
    %172 = vmatpush1.msra.mxu0 %v144
    %173 = vmatprep.subr.mxu0 0.0
    %174 = vmatpush1.msra.mxu0 %v145
    %175 = vmatprep.subr.mxu0 0.0
    %176 = vmatpush1.msra.mxu0 %v146
    %177 = vmatprep.subr.mxu0 0.0
    %178 = vmatpush1.msra.mxu0 %v147
    %179 = vmatprep.subr.mxu0 0.0
    %180 = vmatpush1.msra.mxu0 %v148
    %181 = vmatprep.subr.mxu0 0.0
    %182 = vmatpush1.msra.mxu0 0.0
    %183 = vmatprep.subr.mxu0 0.0
    %184 = vmatpush1.msra.mxu0 0.0
    %185 = vmatprep.subr.mxu0 0.0
    %186 = vmatpush1.msra.mxu0 0.0
    %187 = vmatprep.subr.mxu0 0.0
    %188 = vmatpush1.msra.mxu0 0.0
    %189 = vmatprep.subr.mxu0 0.0
    %190 = vmatpush1.msra.mxu0 0.0
    %191 = vmatprep.subr.mxu0 0.0
    %192 = vmatpush1.msra.mxu0 0.0
    %193 = vmatprep.subr.mxu0 0.0
    %194 = vmatpush1.msra.mxu0 0.0
    %195 = vmatprep.subr.mxu0 0.0
    %196 = vmatpush1.msra.mxu0 0.0
    %197 = vmatprep.subr.mxu0 0.0
    %198 = vmatpush1.msra.mxu0 0.0
    %199 = vmatprep.subr.mxu0 0.0
    %200 = vmatpush1.msra.mxu0 0.0
    %201 = vmatprep.subr.mxu0 0.0
    %202 = vmatpush1.msra.mxu0 0.0
    %203 = vmatprep.subr.mxu0 0.0
    %204 = vmatpush1.msra.mxu0 0.0
    %205 = vmatprep.subr.mxu0 0.0
    %206 = vmatpush1.msra.mxu0 0.0
    %207 = vmatprep.subr.mxu0 0.0
    %208 = vmatpush1.msra.mxu0 0.0
    %209 = vmatprep.subr.mxu0 0.0
    %210 = vmatpush1.msra.mxu0 0.0
    %211 = vmatprep.subr.mxu0 0.0
    %212 = vmatpush1.msra.mxu0 0.0
    %213 = vmatprep.mubr.f32.mxu0 0.0
    %214 = vmatmul.mubr.f32.gmra.mrb[0].mxu0 %v118
    %v215 = vpop.f32.mrb[0].mxu0
    %v216 = vadd.f32 0.0, %v215
    %v217 = vpop.f32.mrb[0].mxu0
    %218 = vmatprep.mubr.f32.mxu0 0.0
    %219 = vmatmul.mubr.f32.gmra.mrb[0].mxu0 %v119
    %v220 = vpop.f32.mrb[0].mxu0
    %v221 = vadd.f32 0.0, %v220
    %v222 = vpop.f32.mrb[0].mxu0
    %223 = vdwg.mxu0
    %vm224 = vcmask 64512
    %225 = vst.msk [vmem:[%s6] sm:$0xff] %vm224, %v216
    %226 = vst.msk [vmem:[%s6 + $0x8] sm:$0xff] %vm224, %v221
    // Predicated region
    $region18: #{tpu_custom_call.1} parent=1 // pred_check
      _
    $region19: #{tpu_custom_call.1} parent=1 // pred_check_branch
      %228 = sbr.rel (0) target = $region21
    $region20: #{tpu_custom_call.1} parent=1 // pred_region
      %s230 = ssub.s32 256, 256
      %231 = vsyncadd [#allocation3], %s230
      %s232 = sshll.u32 [#allocation2], 4
      %s233 = int_to_ptr.vmem [resolvable:$true] %s232
      %238 = dma.vmem_to_hbm [thread:$0]  %s233, 256, %s4, [#allocation3], 128, 128, 8
    $region21: #{tpu_custom_call.1} parent=1 // pred_fallthru
      _
    // Predicated region
    $region22: #{tpu_custom_call.1} parent=1 // pred_check
      _
    $region23: #{tpu_custom_call.1} parent=1 // pred_check_branch
      %240 = sbr.rel (0) target = $region25
    $region24: #{tpu_custom_call.1} parent=1 // pred_region
      %s242 = ssub.s32 256, 256
      %243 = vsyncadd [#allocation5], %s242
      %s244 = sshll.u32 [#allocation4], 4
      %s245 = int_to_ptr.vmem [resolvable:$true] %s244
      %250 = dma.vmem_to_hbm [thread:$0]  %s245, 256, %s5, [#allocation5], 128, 128, 8
    $region25: #{tpu_custom_call.1} parent=1 // pred_fallthru
      _
    // Predicated region
    $region26: #{tpu_custom_call.1} parent=1 // pred_check
      _
    $region27: #{tpu_custom_call.1} parent=1 // pred_check_branch
      %252 = sbr.rel (0) target = $region29
    $region28: #{tpu_custom_call.1} parent=1 // pred_region
      _
    $region29: #{tpu_custom_call.1} parent=1 // pred_fallthru
      _
    // Predicated region
    $region30: #{tpu_custom_call.1} parent=1 // pred_check
      _
    $region31: #{tpu_custom_call.1} parent=1 // pred_check_branch
      %254 = sbr.rel (0) target = $region33
    $region32: #{tpu_custom_call.1} parent=1 // pred_region
      %255 = dma.done [#allocation3], 256
    $region33: #{tpu_custom_call.1} parent=1 // pred_fallthru
      _
    // Predicated region
    $region34: #{tpu_custom_call.1} parent=1 // pred_check
      _
    $region35: #{tpu_custom_call.1} parent=1 // pred_check_branch
      %257 = sbr.rel (0) target = $region37
    $region36: #{tpu_custom_call.1} parent=1 // pred_region
      %258 = dma.done [#allocation5], 256
    $region37: #{tpu_custom_call.1} parent=1 // pred_fallthru
      _
    // Predicated region
    $region38: #{tpu_custom_call.1} parent=1 // pred_check
      _
    $region39: #{tpu_custom_call.1} parent=1 // pred_check_branch
      %260 = sbr.rel (0) target = $region41
    $region40: #{tpu_custom_call.1} parent=1 // pred_region
      _
    $region41: #{tpu_custom_call.1} parent=1 // pred_fallthru
      _
    %261 = vsyncpa [#allocation3], 1
    %262 = vsyncpa [#allocation5], 1

</llo_original>
